<compile_context>
chip_gen: v6e
topology: v6e:2x2x1
jax: 0.10.0
libtpu: 0.0.40
codegen_flags: <defaults>
</compile_context>

<pallas_src>
import jax
import jax.numpy as jnp
from jax.experimental import pallas as pl
from jax.experimental.pallas import tpu as pltpu


def _rmsnorm_kernel(eps, inv_h, x_ref, w_ref, o_ref):
    # x_ref: (TM, H) tile of rows; w_ref: (1, H) weight (activation dtype);
    # o_ref: (TM, H) output tile.
    x = x_ref[...].astype(jnp.float32)
    # Cross-lane reduce (XLU) + EUP rsqrt: both off the VALU/load-store path.
    var = jnp.sum(x * x, axis=-1, keepdims=True) * inv_h   # (TM, 1)
    inv = jax.lax.rsqrt(var + eps)                          # (TM, 1)
    y = (x * inv).astype(o_ref.dtype)
    o_ref[...] = w_ref[...] * y                             # (1,H) broadcasts over rows


def _round_up(n, m):
    return ((n + m - 1) // m) * m


def deepseek_v3_rmsnorm(hidden_states, weight, eps=1e-6, block_rows=None):
    """hidden_states: (..., hidden); weight: (hidden,). Returns activation-dtype output."""
    orig_shape = hidden_states.shape
    hidden = orig_shape[-1]
    dtype = hidden_states.dtype
    dtype_bytes = jnp.dtype(dtype).itemsize

    x2d = hidden_states.reshape(-1, hidden)
    rows = x2d.shape[0]

    if block_rows is None:
        # VMEM budget (conservative, fits v7x's 64 MiB physical VMEM):
        #   double-buffered in+out tiles: 4 * br * H * dtype_bytes
        #   f32 intermediates (x, x*x, x*inv): ~3 * br * H * 4 bytes
        budget_bytes = 40 << 20
        per_row_bytes = hidden * (4 * dtype_bytes + 12)
        br = budget_bytes // per_row_bytes
        block_rows = int(max(8, min(1024, (br // 8) * 8)))

    # Never use a bigger block than the (8-aligned) row count; keep multiple of 8.
    block_rows = min(block_rows, _round_up(max(rows, 1), 8))
    block_rows = max(8, (block_rows // 8) * 8)

    # Pad rows so the grid tiles evenly (rows are independent; padding is cheap).
    padded_rows = pl.cdiv(rows, block_rows) * block_rows
    if padded_rows != rows:
        x2d = jnp.pad(x2d, ((0, padded_rows - rows), (0, 0)))

    # Lane-dense resident weight tile, pre-cast to the activation dtype.
    w2d = weight.astype(dtype).reshape(1, hidden)

    grid = (padded_rows // block_rows,)

    # Raise the scoped VMEM limit to cover the big tiles + f32 intermediates.
    tile_bytes = block_rows * hidden * dtype_bytes
    need = 4 * tile_bytes + 3 * block_rows * hidden * 4 + 2 * hidden * dtype_bytes + (2 << 20)
    vmem_limit = int(min(max(need, 32 << 20), 56 << 20))

    inv_h = 1.0 / float(hidden)

    out = pl.pallas_call(
        lambda x_ref, w_ref, o_ref: _rmsnorm_kernel(eps, inv_h, x_ref, w_ref, o_ref),
        out_shape=jax.ShapeDtypeStruct((padded_rows, hidden), dtype),
        grid_spec=pltpu.PrefetchScalarGridSpec(
            num_scalar_prefetch=0,
            grid=grid,
            in_specs=[
                pl.BlockSpec((block_rows, hidden), lambda i: (i, 0)),
                pl.BlockSpec((1, hidden), lambda i: (0, 0)),
            ],
            out_specs=pl.BlockSpec((block_rows, hidden), lambda i: (i, 0)),
        ),
        compiler_params=pltpu.CompilerParams(
            dimension_semantics=("parallel",),
            vmem_limit_bytes=vmem_limit,
        ),
    )(x2d, w2d)

    if padded_rows != rows:
        out = out[:rows]
    return out.reshape(orig_shape)


def _reference(hidden_states, weight, eps=1e-6):
    x = hidden_states.astype(jnp.float32)
    var = jnp.mean(x * x, axis=-1, keepdims=True)
    y = x * jax.lax.rsqrt(var + eps)
    return (weight.astype(hidden_states.dtype) * y.astype(hidden_states.dtype))


if __name__ == "__main__":
    key = jax.random.PRNGKey(0)

    # Test 1: f32, evenly divisible rows.
    batch, seq, hidden = 2, 8, 128
    k1, k2 = jax.random.split(key)
    x = jax.random.normal(k1, (batch, seq, hidden), dtype=jnp.float32)
    weight = jnp.ones((hidden,), dtype=jnp.float32)   # module init: ones(hidden_size)

    out = deepseek_v3_rmsnorm(x, weight, eps=1e-6)
    out = jax.block_until_ready(out)
    ref = _reference(x, weight, eps=1e-6)
    assert out.shape == x.shape and out.dtype == x.dtype
    assert jnp.allclose(out, ref, atol=1e-5, rtol=1e-5)

    # Test 2: bf16 activations, ragged row count (exercises padding path).
    x2 = jax.random.normal(k2, (1, 5, 256), dtype=jnp.bfloat16)
    w2 = jnp.ones((256,), dtype=jnp.bfloat16)
    out2 = jax.block_until_ready(deepseek_v3_rmsnorm(x2, w2, eps=1e-6))
    ref2 = _reference(x2, w2, eps=1e-6)
    assert out2.shape == x2.shape and out2.dtype == x2.dtype
    assert jnp.allclose(out2.astype(jnp.float32), ref2.astype(jnp.float32),
                        atol=1e-2, rtol=1e-2)

    print("KERNEL_OK")
</pallas_src>

<mosaic_0001>
module attributes {stable_mosaic.version = 11 : i64} {
  func.func @_lambda_(%arg0: i32, %arg1: memref<16x128xf32, #tpu.memory_space<vmem>>, %arg2: memref<1x128xf32, #tpu.memory_space<vmem>>, %arg3: memref<16x128xf32, #tpu.memory_space<vmem>>) attributes {dimension_semantics = [#tpu.dimension_semantics<parallel>], iteration_bounds = array<i64: 1>, scalar_prefetch = 0 : i64, scratch_operands = 0 : i64, tpu.core_type = #tpu.core_type<tc>, window_params = [{transform_indices = @transform_0, window_bounds = array<i64: 16, 128>}, {pipeline_mode = #tpu.pipeline_mode<synchronous>, transform_indices = @transform_1, window_bounds = array<i64: 1, 128>}, {transform_indices = @transform_2, window_bounds = array<i64: 16, 128>}]} {
    %c0 = arith.constant 0 : index
    %c0_0 = arith.constant 0 : index
    %0 = vector.load %arg1[%c0, %c0_0] : memref<16x128xf32, #tpu.memory_space<vmem>>, vector<16x128xf32>
    %1 = arith.mulf %0, %0 : vector<16x128xf32>
    %cst = arith.constant dense<0.000000e+00> : vector<16xf32>
    %2 = vector.multi_reduction <add>, %1, %cst [1] : vector<16x128xf32> to vector<16xf32>
    %3 = vector.shape_cast %2 : vector<16xf32> to vector<16x1xf32>
    %cst_1 = arith.constant 7.812500e-03 : f32
    %4 = vector.broadcast %cst_1 : f32 to vector<16x1xf32>
    %5 = arith.mulf %3, %4 : vector<16x1xf32>
    %cst_2 = arith.constant 9.99999997E-7 : f32
    %6 = vector.broadcast %cst_2 : f32 to vector<16x1xf32>
    %7 = arith.addf %5, %6 : vector<16x1xf32>
    %8 = math.rsqrt %7 : vector<16x1xf32>
    %9 = vector.broadcast %8 : vector<16x1xf32> to vector<16x128xf32>
    %10 = arith.mulf %0, %9 : vector<16x128xf32>
    %c0_3 = arith.constant 0 : index
    %c0_4 = arith.constant 0 : index
    %11 = vector.load %arg2[%c0_3, %c0_4] : memref<1x128xf32, #tpu.memory_space<vmem>>, vector<1x128xf32>
    %12 = vector.broadcast %11 : vector<1x128xf32> to vector<16x128xf32>
    %13 = arith.mulf %12, %10 : vector<16x128xf32>
    %c0_5 = arith.constant 0 : index
    %c0_6 = arith.constant 0 : index
    %14 = vector.load %arg3[%c0_5, %c0_6] : memref<16x128xf32, #tpu.memory_space<vmem>>, vector<16x128xf32>
    tpu.vector_store %arg3[%c0_5, %c0_6], %13 {strides = array<i32>} : memref<16x128xf32, #tpu.memory_space<vmem>>, vector<16x128xf32>,
    return
  }
  func.func @transform_0(%arg0: i32) -> (i32, i32) {
    %c0_i32 = arith.constant 0 : i32
    %c0_i32_0 = arith.constant 0 : i32
    return %arg0, %c0_i32 : i32, i32
  }
  func.func @transform_1(%arg0: i32) -> (i32, i32) {
    %c0_i32 = arith.constant 0 : i32
    %c0_i32_0 = arith.constant 0 : i32
    %c0_i32_1 = arith.constant 0 : i32
    return %c0_i32, %c0_i32_0 : i32, i32
  }
  func.func @transform_2(%arg0: i32) -> (i32, i32) {
    %c0_i32 = arith.constant 0 : i32
    %c0_i32_0 = arith.constant 0 : i32
    return %arg0, %c0_i32 : i32, i32
  }
}

</mosaic_0001>

<llo_original>
// kernel: tpu_custom_call.1
$region0: #{tpu_custom_call.1}
  #allocation0 [shape = 'u32[]', space=smem, size = 0x4, offset = 0x4, fixed_abs, tag = 'smem constant byte address 0x4 - core index']
  #allocation1 [shape = 'u32[144,128]{1,0:T(1,128)}', space=vmem, size = 0x12000, scoped, tag = 'internal scratch']
  %s0 = inlined_call_operand.hbm [shape: f32[16,128], index: 0, kind: input, shape index: {}]
  %s1 = inlined_call_operand.vmem [shape: f32[1,128], index: 1, kind: input, shape index: {}]
  %s2 = inlined_call_operand.hbm [shape: f32[16,128], index: 2, kind: output, shape index: {}]
  %s3 = sld [smem:[#allocation0]]
  $region22: #{tpu_custom_call.1} parent=0
    _
  %s5 = ssub.s32 1, %s3
  %s6 = scalar_select 0, %s5, %s3
  $region1: #{tpu_custom_call.1} parent=0
    #allocation2 [shape = 'u8[8192]{0}', space=vmem, size = 0x2000, scoped, tag = 'input window, operand 0, single buffered']
    #allocation3 [shape = 's32[1]{0}', space=sflag, size = 0x4, scoped, tag = 'scoped memory for tpu_custom_call.1']
    #allocation4 [shape = 's32[1]{0}', space=sflag, size = 0x4, scoped, tag = 'scoped memory for tpu_custom_call.1']
    #allocation5 [shape = 'u8[8192]{0}', space=vmem, size = 0x2000, scoped, tag = 'output window, operand 0, single buffered']
    %7 = vsyncpa [#allocation3], 0
    %8 = vsyncpa [#allocation4], 0
    // Predicated region
    $region2: #{tpu_custom_call.1} parent=1 // pred_check
      _
    $region3: #{tpu_custom_call.1} parent=1 // pred_check_branch
      %10 = sbr.rel (0) target = $region5
    $region4: #{tpu_custom_call.1} parent=1 // pred_region
      %s12 = ssub.s32 256, 256
      %13 = vsyncadd [#allocation3], %s12
      %s14 = sshll.u32 [#allocation2], 4
      %s15 = int_to_ptr.vmem [resolvable:$true] %s14
      %20 = dma.hbm_to_vmem [thread:$0]  %s0, 256, %s15, [#allocation3], 128, 128, 8
    $region5: #{tpu_custom_call.1} parent=1 // pred_fallthru
      _
    // Predicated region
    $region6: #{tpu_custom_call.1} parent=1 // pred_check
      _
    $region7: #{tpu_custom_call.1} parent=1 // pred_check_branch
      %22 = sbr.rel (0) target = $region9
    $region8: #{tpu_custom_call.1} parent=1 // pred_region
      _
    $region9: #{tpu_custom_call.1} parent=1 // pred_fallthru
      _
    // Predicated region
    $region10: #{tpu_custom_call.1} parent=1 // pred_check
      _
    $region11: #{tpu_custom_call.1} parent=1 // pred_check_branch
      %24 = sbr.rel (0) target = $region13
    $region12: #{tpu_custom_call.1} parent=1 // pred_region
      %25 = dma.done [#allocation3], 256
    $region13: #{tpu_custom_call.1} parent=1 // pred_fallthru
      _
    %v26 = vld [vmem:[#allocation2] sm:$0xff]
    %v27 = vld [vmem:[#allocation2 + $0x8] sm:$0xff]
    %v28 = vmul.f32 %v26, %v26
    %v29 = vmul.f32 %v27, %v27
    %30 = vadd.xlane.f32.xlu0 %v28
    %v31 = vpop.xlane.xlu0 %30
    %32 = vadd.xlane.f32.xlu0 %v29
    %v33 = vpop.xlane.xlu0 %32
    %v34 = vmul.f32 %v31, 0.0078125
    %v35 = vmul.f32 %v33, 0.0078125
    %v36 = vadd.f32 %v34, 1e-06
    %v37 = vadd.f32 %v35, 1e-06
    %v38 = vrsqrt.pop %v36
    %v39 = vrsqrt.pop %v37
    %v40 = vmul.f32 %v26, %v38
    %v41 = vmul.f32 %v27, %v39
    %v42 = vld [vmem:[%s1] sm:$0x1]
    %v44 = vlaneseq
    %v45 = vshrl.u32 %v44, 7
    %v46 = vsub.s32 0, %v45
    %v47 = vrot.slane %v42, %v46
    %v49 = vmul.f32 %v47, %v40
    %v50 = vmul.f32 %v47, %v41
    %51 = vst [vmem:[#allocation5] sm:$0xff] %v49
    %52 = vst [vmem:[#allocation5 + $0x8] sm:$0xff] %v50
    // Predicated region
    $region14: #{tpu_custom_call.1} parent=1 // pred_check
      _
    $region15: #{tpu_custom_call.1} parent=1 // pred_check_branch
      %54 = sbr.rel (0) target = $region17
    $region16: #{tpu_custom_call.1} parent=1 // pred_region
      %s56 = ssub.s32 256, 256
      %57 = vsyncadd [#allocation4], %s56
      %s58 = sshll.u32 [#allocation5], 4
      %s59 = int_to_ptr.vmem [resolvable:$true] %s58
      %64 = dma.vmem_to_hbm [thread:$0]  %s59, 256, %s2, [#allocation4], 128, 128, 8
    $region17: #{tpu_custom_call.1} parent=1 // pred_fallthru
      _
    // Predicated region
    $region18: #{tpu_custom_call.1} parent=1 // pred_check
      _
    $region19: #{tpu_custom_call.1} parent=1 // pred_check_branch
      %66 = sbr.rel (0) target = $region21
    $region20: #{tpu_custom_call.1} parent=1 // pred_region
      %67 = dma.done [#allocation4], 256
    $region21: #{tpu_custom_call.1} parent=1 // pred_fallthru
      _
    %68 = vsyncpa [#allocation3], 1
    %69 = vsyncpa [#allocation4], 1

</llo_original>
